<compile_context>
chip_gen: v6e
topology: v6e:2x2x1
jax: 0.10.0
libtpu: 0.0.40
codegen_flags: <defaults>
</compile_context>

<pallas_src>
import numpy as np
import jax
import jax.numpy as jnp
from jax.experimental import pallas as pl
from jax.experimental.pallas import tpu as pltpu

NEG_SLOPE = 0.2
IN_FEATURES = 12
HID_FEATURES = 16
OUT_FEATURES = 32
PACK = 4                         # batch rows packed per slab row (4 * 32 == 128 lanes)
LANES = PACK * OUT_FEATURES      # 128


def _leaky_relu(x):
    return jnp.where(x >= 0, x, NEG_SLOPE * x)


def _round_up(x, m):
    return ((x + m - 1) // m) * m


def _round_down(x, m):
    return (x // m) * m


def _block_diag(w, p):
    """(in_f, out_f) -> (p*in_f, p*out_f) block-diagonal with p copies of w."""
    in_f, out_f = w.shape
    eye = jnp.eye(p, dtype=w.dtype)
    return jnp.einsum("pq,io->piqo", eye, w).reshape(p * in_f, p * out_f)


def _vmem_physical_bytes():
    try:
        info = pltpu.get_tpu_info()
        cap = getattr(info, "vmem_capacity_bytes", None)
        if cap:
            return int(cap)
    except Exception:
        pass
    return 64 << 20  # conservative fallback (v7x per-TC VMEM)


def _disc_client2_kernel(x_ref, w1_ref, b1_ref, w2_ref, b2_ref, o_ref):
    # x_ref: (tbp, 48) = 4 packed batch rows per slab row.
    # Weights are 4-fold block-diagonal, biases are 4-fold tiled, so each
    # 12-wide slice of a packed row goes through the same Linear layers.
    x = x_ref[...].astype(jnp.float32)                                   # (tbp, 48)

    h = jnp.dot(x, w1_ref[...], preferred_element_type=jnp.float32)      # (tbp, 64)
    h = _leaky_relu(h + b1_ref[...])

    y = jnp.dot(h, w2_ref[...], preferred_element_type=jnp.float32)      # (tbp, 128)
    y = _leaky_relu(y + b2_ref[...])

    o_ref[...] = y.astype(o_ref.dtype)                                   # lane-dense store


def discriminator_client_2_forward(img, w1, b1, w2, b2, *, tb=16384,
                                   out_dtype=jnp.float32,
                                   small_batch_xla_threshold=0):
    """img: shape (B, ...) with prod(...) == 12. Returns (B, 32) in `out_dtype`."""
    B = img.shape[0]
    x = img.reshape(B, -1)
    assert x.shape[1] == IN_FEATURES, (
        f"expected {IN_FEATURES} flattened features, got {x.shape[1]}")

    # Optional plain-XLA path for tiny batches (pallas_call overhead dominates).
    if B <= small_batch_xla_threshold:
        h = _leaky_relu(x.astype(jnp.float32) @ w1 + b1)
        y = _leaky_relu(h @ w2 + b2)
        return y.astype(out_dtype)

    # ---- pack-by-4 layout (free, row-major-compatible reshapes) ----
    B4 = _round_up(B, PACK)
    if B4 != B:
        x = jnp.pad(x, ((0, B4 - B), (0, 0)))          # <= 3 zero rows
    rows = B4 // PACK
    x_packed = x.reshape(rows, PACK * IN_FEATURES)      # (rows, 48)

    # 4-fold block-diagonal weights / tiled biases (tiny, f32).
    w1p = _block_diag(w1.astype(jnp.float32), PACK)      # (48, 64)
    w2p = _block_diag(w2.astype(jnp.float32), PACK)      # (64, 128)
    b1p = jnp.tile(b1.astype(jnp.float32), PACK).reshape(1, PACK * HID_FEATURES)
    b2p = jnp.tile(b2.astype(jnp.float32), PACK).reshape(1, LANES)

    phys_vmem = _vmem_physical_bytes()

    # ---- tile sizing (tb is in original batch rows; tbp in packed slab rows) ----
    tbp_req = max(1, int(tb) // PACK)
    if rows <= 8:
        tbp = rows                                       # single full block
    else:
        tbp = max(8, _round_up(min(tbp_req, rows), 8))
        # Keep >= 2 grid steps so both TensorCores get work on v7x.
        tbp = min(tbp, _round_up(pl.cdiv(rows, 2), 8))
        # Keep double-buffered in+out blocks within ~half of physical VMEM.
        tbp_vmem_max = max(8, _round_down((phys_vmem // 2) // 2048, 8))
        tbp = min(tbp, tbp_vmem_max)
    grid = (pl.cdiv(rows, tbp),)                         # ragged last block is masked

    # in+out blocks (lane-padded f32), double-buffered, + headroom for weights.
    block_bytes = tbp * 2 * 128 * 4 * 2
    vmem_limit = int(min(phys_vmem * 3 // 4,
                         max(8 << 20, 2 * block_bytes + (2 << 20))))

    out_itemsize = np.dtype(out_dtype).itemsize
    cost = pl.CostEstimate(
        flops=2 * B * (IN_FEATURES * HID_FEATURES + HID_FEATURES * OUT_FEATURES),
        transcendentals=0,
        bytes_accessed=int(B * (IN_FEATURES * np.dtype(x.dtype).itemsize
                                + OUT_FEATURES * out_itemsize)
                           + (48 * 64 + 64 * 128 + 64 + 128) * 4),
    )

    out_packed = pl.pallas_call(
        _disc_client2_kernel,
        out_shape=jax.ShapeDtypeStruct((rows, LANES), out_dtype),
        grid=grid,
        in_specs=[
            # Batch-tiled packed activations (pipelined across grid steps).
            pl.BlockSpec((tbp, PACK * IN_FEATURES), lambda i: (i, 0)),
            # Weights / biases: constant block index -> fetched once, VMEM-resident.
            pl.BlockSpec((PACK * IN_FEATURES, PACK * HID_FEATURES), lambda i: (0, 0)),
            pl.BlockSpec((1, PACK * HID_FEATURES), lambda i: (0, 0)),
            pl.BlockSpec((PACK * HID_FEATURES, LANES), lambda i: (0, 0)),
            pl.BlockSpec((1, LANES), lambda i: (0, 0)),
        ],
        out_specs=pl.BlockSpec((tbp, LANES), lambda i: (i, 0)),
        compiler_params=pltpu.CompilerParams(
            dimension_semantics=("parallel",),
            vmem_limit_bytes=vmem_limit),
        cost_estimate=cost,
    )(x_packed, w1p, b1p, w2p, b2p)

    out = out_packed.reshape(B4, OUT_FEATURES)           # free reshape
    return out[:B] if B4 != B else out


def init_params(key):
    """torch.nn.Linear-style init: U(-1/sqrt(fan_in), 1/sqrt(fan_in)); W stored (in, out)."""
    k1, k2, k3, k4 = jax.random.split(key, 4)
    lim1 = 1.0 / jnp.sqrt(12.0)
    lim2 = 1.0 / jnp.sqrt(16.0)
    w1 = jax.random.uniform(k1, (IN_FEATURES, HID_FEATURES), jnp.float32, -lim1, lim1)
    b1 = jax.random.uniform(k2, (HID_FEATURES,), jnp.float32, -lim1, lim1)
    w2 = jax.random.uniform(k3, (HID_FEATURES, OUT_FEATURES), jnp.float32, -lim2, lim2)
    b2 = jax.random.uniform(k4, (OUT_FEATURES,), jnp.float32, -lim2, lim2)
    return w1, b1, w2, b2


def _reference_forward(img, w1, b1, w2, b2):
    x = img.reshape(img.shape[0], -1).astype(jnp.float32)
    h = _leaky_relu(x @ w1 + b1)
    return _leaky_relu(h @ w2 + b2)


if __name__ == "__main__":
    key = jax.random.PRNGKey(0)
    k_params, k_a, k_b, k_c = jax.random.split(key, 4)
    w1, b1, w2, b2 = init_params(k_params)

    # Case 1: tiny batch (B=4), (3,2,2) image -> 12 flattened features.
    img_small = jax.random.normal(k_a, (4, 3, 2, 2), jnp.float32)
    out_small = jax.block_until_ready(
        discriminator_client_2_forward(img_small, w1, b1, w2, b2))
    ref_small = _reference_forward(img_small, w1, b1, w2, b2)
    assert out_small.shape == (4, OUT_FEATURES), out_small.shape
    assert jnp.allclose(out_small, ref_small, atol=1e-5, rtol=1e-5), "small-batch mismatch"

    # Case 2: B=300 with a small tile -> multi-step grid, ragged (masked) last block.
    img_mid = jax.random.normal(k_b, (300, 3, 2, 2), jnp.float32)
    out_mid = jax.block_until_ready(
        discriminator_client_2_forward(img_mid, w1, b1, w2, b2, tb=128))
    ref_mid = _reference_forward(img_mid, w1, b1, w2, b2)
    assert out_mid.shape == (300, OUT_FEATURES), out_mid.shape
    assert jnp.allclose(out_mid, ref_mid, atol=1e-5, rtol=1e-5), "tiled-batch mismatch"

    # Case 3: B=37 (not a multiple of 4) with bf16 writeback (f32 accumulation).
    img_odd = jax.random.normal(k_c, (37, 3, 2, 2), jnp.float32)
    out_odd = jax.block_until_ready(
        discriminator_client_2_forward(img_odd, w1, b1, w2, b2, out_dtype=jnp.bfloat16))
    ref_odd = _reference_forward(img_odd, w1, b1, w2, b2)
    assert out_odd.shape == (37, OUT_FEATURES), out_odd.shape
    assert jnp.allclose(out_odd.astype(jnp.float32), ref_odd, atol=3e-2, rtol=3e-2), \
        "bf16 / odd-batch mismatch"

    print("KERNEL_OK")
</pallas_src>

<mosaic_0001>
module attributes {stable_mosaic.version = 11 : i64} {
  func.func @_disc_client2_kernel(%arg0: i32, %arg1: memref<1x48xf32, #tpu.memory_space<vmem>>, %arg2: memref<48x64xf32, #tpu.memory_space<vmem>>, %arg3: memref<1x64xf32, #tpu.memory_space<vmem>>, %arg4: memref<64x128xf32, #tpu.memory_space<vmem>>, %arg5: memref<1x128xf32, #tpu.memory_space<vmem>>, %arg6: memref<1x128xf32, #tpu.memory_space<vmem>>) attributes {dimension_semantics = [#tpu.dimension_semantics<parallel>], iteration_bounds = array<i64: 1>, scalar_prefetch = 0 : i64, scratch_operands = 0 : i64, tpu.core_type = #tpu.core_type<tc>, window_params = [{transform_indices = @transform_0, window_bounds = array<i64: 1, 48>}, {pipeline_mode = #tpu.pipeline_mode<synchronous>, transform_indices = @transform_1, window_bounds = array<i64: 48, 64>}, {pipeline_mode = #tpu.pipeline_mode<synchronous>, transform_indices = @transform_2, window_bounds = array<i64: 1, 64>}, {pipeline_mode = #tpu.pipeline_mode<synchronous>, transform_indices = @transform_3, window_bounds = array<i64: 64, 128>}, {pipeline_mode = #tpu.pipeline_mode<synchronous>, transform_indices = @transform_4, window_bounds = array<i64: 1, 128>}, {transform_indices = @transform_5, window_bounds = array<i64: 1, 128>}]} {
    %c0 = arith.constant 0 : index
    %c0_0 = arith.constant 0 : index
    %0 = vector.load %arg1[%c0, %c0_0] : memref<1x48xf32, #tpu.memory_space<vmem>>, vector<1x48xf32>
    %c0_1 = arith.constant 0 : index
    %c0_2 = arith.constant 0 : index
    %1 = vector.load %arg2[%c0_1, %c0_2] : memref<48x64xf32, #tpu.memory_space<vmem>>, vector<48x64xf32>
    %cst = arith.constant dense<0.000000e+00> : vector<1x64xf32>
    %2 = tpu.matmul %0, %1, %cst {dimension_numbers = #tpu.dot_dimension_numbers<[1], [0], [0], [1], [0, 0, 1, 1], [], []>} : vector<1x48xf32>, vector<48x64xf32>, vector<1x64xf32> -> vector<1x64xf32>
    %c0_3 = arith.constant 0 : index
    %c0_4 = arith.constant 0 : index
    %3 = vector.load %arg3[%c0_3, %c0_4] : memref<1x64xf32, #tpu.memory_space<vmem>>, vector<1x64xf32>
    %4 = arith.addf %2, %3 : vector<1x64xf32>
    %cst_5 = arith.constant 0.000000e+00 : f32
    %5 = vector.broadcast %cst_5 : f32 to vector<1x64xf32>
    %6 = arith.cmpf oge, %4, %5 : vector<1x64xf32>
    %cst_6 = arith.constant 2.000000e-01 : f32
    %7 = vector.broadcast %cst_6 : f32 to vector<1x64xf32>
    %8 = arith.mulf %7, %4 : vector<1x64xf32>
    %9 = arith.select %6, %4, %8 : vector<1x64xi1>, vector<1x64xf32>
    %c0_7 = arith.constant 0 : index
    %c0_8 = arith.constant 0 : index
    %10 = vector.load %arg4[%c0_7, %c0_8] : memref<64x128xf32, #tpu.memory_space<vmem>>, vector<64x128xf32>
    %cst_9 = arith.constant dense<0.000000e+00> : vector<1x128xf32>
    %11 = tpu.matmul %9, %10, %cst_9 {dimension_numbers = #tpu.dot_dimension_numbers<[1], [0], [0], [1], [0, 0, 1, 1], [], []>} : vector<1x64xf32>, vector<64x128xf32>, vector<1x128xf32> -> vector<1x128xf32>
    %c0_10 = arith.constant 0 : index
    %c0_11 = arith.constant 0 : index
    %12 = vector.load %arg5[%c0_10, %c0_11] : memref<1x128xf32, #tpu.memory_space<vmem>>, vector<1x128xf32>
    %13 = arith.addf %11, %12 : vector<1x128xf32>
    %cst_12 = arith.constant 0.000000e+00 : f32
    %14 = vector.broadcast %cst_12 : f32 to vector<1x128xf32>
    %15 = arith.cmpf oge, %13, %14 : vector<1x128xf32>
    %cst_13 = arith.constant 2.000000e-01 : f32
    %16 = vector.broadcast %cst_13 : f32 to vector<1x128xf32>
    %17 = arith.mulf %16, %13 : vector<1x128xf32>
    %18 = arith.select %15, %13, %17 : vector<1x128xi1>, vector<1x128xf32>
    %c0_14 = arith.constant 0 : index
    %c0_15 = arith.constant 0 : index
    %19 = vector.load %arg6[%c0_14, %c0_15] : memref<1x128xf32, #tpu.memory_space<vmem>>, vector<1x128xf32>
    tpu.vector_store %arg6[%c0_14, %c0_15], %18 {strides = array<i32>} : memref<1x128xf32, #tpu.memory_space<vmem>>, vector<1x128xf32>,
    return
  }
  func.func @transform_0(%arg0: i32) -> (i32, i32) {
    %c0_i32 = arith.constant 0 : i32
    %c0_i32_0 = arith.constant 0 : i32
    return %arg0, %c0_i32 : i32, i32
  }
  func.func @transform_1(%arg0: i32) -> (i32, i32) {
    %c0_i32 = arith.constant 0 : i32
    %c0_i32_0 = arith.constant 0 : i32
    %c0_i32_1 = arith.constant 0 : i32
    return %c0_i32, %c0_i32_0 : i32, i32
  }
  func.func @transform_2(%arg0: i32) -> (i32, i32) {
    %c0_i32 = arith.constant 0 : i32
    %c0_i32_0 = arith.constant 0 : i32
    %c0_i32_1 = arith.constant 0 : i32
    return %c0_i32, %c0_i32_0 : i32, i32
  }
  func.func @transform_3(%arg0: i32) -> (i32, i32) {
    %c0_i32 = arith.constant 0 : i32
    %c0_i32_0 = arith.constant 0 : i32
    %c0_i32_1 = arith.constant 0 : i32
    return %c0_i32, %c0_i32_0 : i32, i32
  }
  func.func @transform_4(%arg0: i32) -> (i32, i32) {
    %c0_i32 = arith.constant 0 : i32
    %c0_i32_0 = arith.constant 0 : i32
    %c0_i32_1 = arith.constant 0 : i32
    return %c0_i32, %c0_i32_0 : i32, i32
  }
  func.func @transform_5(%arg0: i32) -> (i32, i32) {
    %c0_i32 = arith.constant 0 : i32
    %c0_i32_0 = arith.constant 0 : i32
    return %arg0, %c0_i32 : i32, i32
  }
}

</mosaic_0001>

<llo_original>
// kernel: tpu_custom_call.1
$region0: #{tpu_custom_call.1}
  #allocation0 [shape = 'u32[]', space=smem, size = 0x4, offset = 0x4, fixed_abs, tag = 'smem constant byte address 0x4 - core index']
  #allocation1 [shape = 'u32[144,128]{1,0:T(1,128)}', space=vmem, size = 0x12000, scoped, tag = 'internal scratch']
  %s0 = inlined_call_operand.hbm [shape: f32[1,48], index: 0, kind: input, shape index: {}]
  %s1 = inlined_call_operand.hbm [shape: f32[48,64], index: 1, kind: input, shape index: {}]
  %s2 = inlined_call_operand.vmem [shape: f32[1,64], index: 2, kind: input, shape index: {}]
  %s3 = inlined_call_operand.hbm [shape: f32[64,128], index: 3, kind: input, shape index: {}]
  %s4 = inlined_call_operand.vmem [shape: f32[1,128], index: 4, kind: input, shape index: {}]
  %s5 = inlined_call_operand.hbm [shape: f32[1,128], index: 5, kind: output, shape index: {}]
  %s6 = sld [smem:[#allocation0]]
  $region42: #{tpu_custom_call.1} parent=0
    _
  %s8 = ssub.s32 1, %s6
  %s9 = scalar_select 0, %s8, %s6
  $region1: #{tpu_custom_call.1} parent=0
    #allocation2 [shape = 'u8[512]{0}', space=vmem, size = 0x400, scoped, tag = 'input window, operand 0, single buffered']
    #allocation3 [shape = 's32[1]{0}', space=sflag, size = 0x4, scoped, tag = 'scoped memory for tpu_custom_call.1']
    #allocation4 [shape = 's32[1]{0}', space=sflag, size = 0x4, scoped, tag = 'scoped memory for tpu_custom_call.1']
    #allocation5 [shape = 'u8[24576]{0}', space=vmem, size = 0x6000, scoped, tag = 'input window, operand 1, single buffered']
    #allocation6 [shape = 's32[1]{0}', space=sflag, size = 0x4, scoped, tag = 'scoped memory for tpu_custom_call.1']
    #allocation7 [shape = 'u8[32768]{0}', space=vmem, size = 0x8000, scoped, tag = 'input window, operand 3, single buffered']
    #allocation8 [shape = 'u8[512]{0}', space=vmem, size = 0x400, scoped, tag = 'output window, operand 0, single buffered']
    %10 = vsyncpa [#allocation3], 0
    %11 = vsyncpa [#allocation6], 0
    %12 = vsyncpa [#allocation4], 0
    // Predicated region
    $region2: #{tpu_custom_call.1} parent=1 // pred_check
      _
    $region3: #{tpu_custom_call.1} parent=1 // pred_check_branch
      %14 = sbr.rel (0) target = $region5
    $region4: #{tpu_custom_call.1} parent=1 // pred_region
      %s16 = ssub.s32 16, 16
      %17 = vsyncadd [#allocation3], %s16
      %s19 = sshll.u32 [#allocation2], 4
      %s20 = int_to_ptr.vmem [resolvable:$true] %s19
      %22 = dma.hbm_to_vmem [thread:$0]  %s0, 16, %s20, [#allocation3]
    $region5: #{tpu_custom_call.1} parent=1 // pred_fallthru
      _
    // Predicated region
    $region6: #{tpu_custom_call.1} parent=1 // pred_check
      _
    $region7: #{tpu_custom_call.1} parent=1 // pred_check_branch
      %24 = sbr.rel (0) target = $region9
    $region8: #{tpu_custom_call.1} parent=1 // pred_region
      %s26 = ssub.s32 768, 768
      %27 = vsyncadd [#allocation6], %s26
      %s28 = sshll.u32 [#allocation5], 4
      %s29 = int_to_ptr.vmem [resolvable:$true] %s28
      %34 = dma.hbm_to_vmem [thread:$0]  %s1, 768, %s29, [#allocation6], 128, 128, 8
    $region9: #{tpu_custom_call.1} parent=1 // pred_fallthru
      _
    // Predicated region
    $region10: #{tpu_custom_call.1} parent=1 // pred_check
      _
    $region11: #{tpu_custom_call.1} parent=1 // pred_check_branch
      %36 = sbr.rel (0) target = $region13
    $region12: #{tpu_custom_call.1} parent=1 // pred_region
      _
    $region13: #{tpu_custom_call.1} parent=1 // pred_fallthru
      _
    // Predicated region
    $region14: #{tpu_custom_call.1} parent=1 // pred_check
      _
    $region15: #{tpu_custom_call.1} parent=1 // pred_check_branch
      %38 = sbr.rel (0) target = $region17
    $region16: #{tpu_custom_call.1} parent=1 // pred_region
      %s40 = ssub.s32 1024, 1024
      %41 = vsyncadd [#allocation6], %s40
      %s42 = sshll.u32 [#allocation7], 4
      %s43 = int_to_ptr.vmem [resolvable:$true] %s42
      %48 = dma.hbm_to_vmem [thread:$0]  %s3, 1024, %s43, [#allocation6], 128, 128, 8
    $region17: #{tpu_custom_call.1} parent=1 // pred_fallthru
      _
    // Predicated region
    $region18: #{tpu_custom_call.1} parent=1 // pred_check
      _
    $region19: #{tpu_custom_call.1} parent=1 // pred_check_branch
      %50 = sbr.rel (0) target = $region21
    $region20: #{tpu_custom_call.1} parent=1 // pred_region
      _
    $region21: #{tpu_custom_call.1} parent=1 // pred_fallthru
      _
    // Predicated region
    $region22: #{tpu_custom_call.1} parent=1 // pred_check
      _
    $region23: #{tpu_custom_call.1} parent=1 // pred_check_branch
      %52 = sbr.rel (0) target = $region25
    $region24: #{tpu_custom_call.1} parent=1 // pred_region
      %53 = dma.done [#allocation3], 16
    $region25: #{tpu_custom_call.1} parent=1 // pred_fallthru
      _
    // Predicated region
    $region26: #{tpu_custom_call.1} parent=1 // pred_check
      _
    $region27: #{tpu_custom_call.1} parent=1 // pred_check_branch
      %55 = sbr.rel (0) target = $region29
    $region28: #{tpu_custom_call.1} parent=1 // pred_region
      %56 = dma.done [#allocation6], 768
    $region29: #{tpu_custom_call.1} parent=1 // pred_fallthru
      _
    // Predicated region
    $region30: #{tpu_custom_call.1} parent=1 // pred_check
      _
    $region31: #{tpu_custom_call.1} parent=1 // pred_check_branch
      %58 = sbr.rel (0) target = $region33
    $region32: #{tpu_custom_call.1} parent=1 // pred_region
      %59 = dma.done [#allocation6], 1024
    $region33: #{tpu_custom_call.1} parent=1 // pred_fallthru
      _
    %v60 = vld [vmem:[#allocation2] sm:$0x1]
    %v61 = vld [vmem:[#allocation5] sm:$0xff]
    %v62 = vld [vmem:[#allocation5 + $0x8] sm:$0xff]
    %v63 = vld [vmem:[#allocation5 + $0x10] sm:$0xff]
    %v64 = vld [vmem:[#allocation5 + $0x18] sm:$0xff]
    %v65 = vld [vmem:[#allocation5 + $0x20] sm:$0xff]
    %v66 = vld [vmem:[#allocation5 + $0x28] sm:$0xff]
    %v67 = vld [vmem:[%s2] sm:$0x1]
    %vm68 = vcmask 392192
    %v70 = vsel %vm68, %v60, 0
    %72 = vmatprep.subr.mxu0 0.0
    %73 = vmatpush1.msra.mxu0 0.0
    %74 = vmatprep.subr.mxu0 0.0
    %75 = vmatpush1.msra.mxu0 0.0
    %76 = vmatprep.subr.mxu0 0.0
    %77 = vmatpush1.msra.mxu0 0.0
    %78 = vmatprep.subr.mxu0 0.0
    %79 = vmatpush1.msra.mxu0 0.0
    %80 = vmatprep.subr.mxu0 0.0
    %81 = vmatpush1.msra.mxu0 0.0
    %82 = vmatprep.subr.mxu0 0.0
    %83 = vmatpush1.msra.mxu0 0.0
    %84 = vmatprep.subr.mxu0 0.0
    %85 = vmatpush1.msra.mxu0 0.0
    %86 = vmatprep.subr.mxu0 0.0
    %87 = vmatpush1.msra.mxu0 0.0
    %88 = vmatprep.subr.mxu0 0.0
    %89 = vmatpush1.msra.mxu0 0.0
    %90 = vmatprep.subr.mxu0 0.0
    %91 = vmatpush1.msra.mxu0 0.0
    %92 = vmatprep.subr.mxu0 0.0
    %93 = vmatpush1.msra.mxu0 %v66
    %94 = vmatprep.subr.mxu0 0.0
    %95 = vmatpush1.msra.mxu0 %v65
    %96 = vmatprep.subr.mxu0 0.0
    %97 = vmatpush1.msra.mxu0 %v64
    %98 = vmatprep.subr.mxu0 0.0
    %99 = vmatpush1.msra.mxu0 %v63
    %100 = vmatprep.subr.mxu0 0.0
    %101 = vmatpush1.msra.mxu0 %v62
    %102 = vmatprep.subr.mxu0 0.0
    %103 = vmatpush1.msra.mxu0 %v61
    %104 = vmatprep.subr.mxu0 0.0
    %105 = vmatpush2.msra.mxu0 0.0
    %106 = vmatprep.subr.mxu0 0.0
    %107 = vmatpush2.msra.mxu0 0.0
    %108 = vmatprep.subr.mxu0 0.0
    %109 = vmatpush2.msra.mxu0 0.0
    %110 = vmatprep.subr.mxu0 0.0
    %111 = vmatpush2.msra.mxu0 0.0
    %112 = vmatprep.subr.mxu0 0.0
    %113 = vmatpush2.msra.mxu0 0.0
    %114 = vmatprep.subr.mxu0 0.0
    %115 = vmatpush2.msra.mxu0 0.0
    %116 = vmatprep.subr.mxu0 0.0
    %117 = vmatpush2.msra.mxu0 0.0
    %118 = vmatprep.subr.mxu0 0.0
    %119 = vmatpush2.msra.mxu0 0.0
    %120 = vmatprep.subr.mxu0 0.0
    %121 = vmatpush2.msra.mxu0 0.0
    %122 = vmatprep.subr.mxu0 0.0
    %123 = vmatpush2.msra.mxu0 0.0
    %124 = vmatprep.subr.mxu0 0.0
    %125 = vmatpush2.msra.mxu0 0.0
    %126 = vmatprep.subr.mxu0 0.0
    %127 = vmatpush2.msra.mxu0 0.0
    %128 = vmatprep.subr.mxu0 0.0
    %129 = vmatpush2.msra.mxu0 0.0
    %130 = vmatprep.subr.mxu0 0.0
    %131 = vmatpush2.msra.mxu0 0.0
    %132 = vmatprep.subr.mxu0 0.0
    %133 = vmatpush2.msra.mxu0 0.0
    %134 = vmatprep.subr.mxu0 0.0
    %135 = vmatpush2.msra.mxu0 0.0
    %136 = vmatprep.mubr.f32.mxu0 0.0
    %137 = vmatmul.mubr.f32.gmra.mxu0 %v70
    %v138 = vpop.f32.mrf.mxu0
    %v139 = vadd.f32 %v67, %v138
    %v140 = vpop.f32.mrf.mxu0
    %141 = vdwg.mxu0
    %vm142 = vcmp.ge.f32.partialorder %v139, 0.0
    %v143 = vmul.f32 %v139, 0.2
    %v144 = vsel %vm142, %v139, %v143
    %v145 = vld [vmem:[#allocation7] sm:$0xff]
    %v146 = vld [vmem:[#allocation7 + $0x8] sm:$0xff]
    %v147 = vld [vmem:[#allocation7 + $0x10] sm:$0xff]
    %v148 = vld [vmem:[#allocation7 + $0x18] sm:$0xff]
    %v149 = vld [vmem:[#allocation7 + $0x20] sm:$0xff]
    %v150 = vld [vmem:[#allocation7 + $0x28] sm:$0xff]
    %v151 = vld [vmem:[#allocation7 + $0x30] sm:$0xff]
    %v152 = vld [vmem:[#allocation7 + $0x38] sm:$0xff]
    %v153 = vld [vmem:[%s4] sm:$0x1]
    %vm154 = vcmask 523264
    %v156 = vsel %vm154, %v144, 0
    %158 = vmatprep.subr.mxu0 0.0
    %159 = vmatpush1.msra.mxu0 0.0
    %160 = vmatprep.subr.mxu0 0.0
    %161 = vmatpush1.msra.mxu0 0.0
    %162 = vmatprep.subr.mxu0 0.0
    %163 = vmatpush1.msra.mxu0 0.0
    %164 = vmatprep.subr.mxu0 0.0
    %165 = vmatpush1.msra.mxu0 0.0
    %166 = vmatprep.subr.mxu0 0.0
    %167 = vmatpush1.msra.mxu0 0.0
    %168 = vmatprep.subr.mxu0 0.0
    %169 = vmatpush1.msra.mxu0 0.0
    %170 = vmatprep.subr.mxu0 0.0
    %171 = vmatpush1.msra.mxu0 0.0
    %172 = vmatprep.subr.mxu0 0.0
    %173 = vmatpush1.msra.mxu0 0.0
    %174 = vmatprep.subr.mxu0 0.0
    %175 = vmatpush1.msra.mxu0 %v152
    %176 = vmatprep.subr.mxu0 0.0
    %177 = vmatpush1.msra.mxu0 %v151
    %178 = vmatprep.subr.mxu0 0.0
    %179 = vmatpush1.msra.mxu0 %v150
    %180 = vmatprep.subr.mxu0 0.0
    %181 = vmatpush1.msra.mxu0 %v149
    %182 = vmatprep.subr.mxu0 0.0
    %183 = vmatpush1.msra.mxu0 %v148
    %184 = vmatprep.subr.mxu0 0.0
    %185 = vmatpush1.msra.mxu0 %v147
    %186 = vmatprep.subr.mxu0 0.0
    %187 = vmatpush1.msra.mxu0 %v146
    %188 = vmatprep.subr.mxu0 0.0
    %189 = vmatpush1.msra.mxu0 %v145
    %190 = vmatprep.subr.mxu0 0.0
    %191 = vmatpush2.msra.mxu0 0.0
    %192 = vmatprep.subr.mxu0 0.0
    %193 = vmatpush2.msra.mxu0 0.0
    %194 = vmatprep.subr.mxu0 0.0
    %195 = vmatpush2.msra.mxu0 0.0
    %196 = vmatprep.subr.mxu0 0.0
    %197 = vmatpush2.msra.mxu0 0.0
    %198 = vmatprep.subr.mxu0 0.0
    %199 = vmatpush2.msra.mxu0 0.0
    %200 = vmatprep.subr.mxu0 0.0
    %201 = vmatpush2.msra.mxu0 0.0
    %202 = vmatprep.subr.mxu0 0.0
    %203 = vmatpush2.msra.mxu0 0.0
    %204 = vmatprep.subr.mxu0 0.0
    %205 = vmatpush2.msra.mxu0 0.0
    %206 = vmatprep.subr.mxu0 0.0
    %207 = vmatpush2.msra.mxu0 0.0
    %208 = vmatprep.subr.mxu0 0.0
    %209 = vmatpush2.msra.mxu0 0.0
    %210 = vmatprep.subr.mxu0 0.0
    %211 = vmatpush2.msra.mxu0 0.0
    %212 = vmatprep.subr.mxu0 0.0
    %213 = vmatpush2.msra.mxu0 0.0
    %214 = vmatprep.subr.mxu0 0.0
    %215 = vmatpush2.msra.mxu0 0.0
    %216 = vmatprep.subr.mxu0 0.0
    %217 = vmatpush2.msra.mxu0 0.0
    %218 = vmatprep.subr.mxu0 0.0
    %219 = vmatpush2.msra.mxu0 0.0
    %220 = vmatprep.subr.mxu0 0.0
    %221 = vmatpush2.msra.mxu0 0.0
    %222 = vmatprep.mubr.f32.mxu0 0.0
    %223 = vmatmul.mubr.f32.gmra.mxu0 %v156
    %v224 = vpop.f32.mrf.mxu0
    %v225 = vadd.f32 %v153, %v224
    %v226 = vpop.f32.mrf.mxu0
    %227 = vdwg.mxu0
    %vm228 = vcmp.ge.f32.partialorder %v225, 0.0
    %v229 = vmul.f32 %v225, 0.2
    %v230 = vsel %vm228, %v225, %v229
    %231 = vst [vmem:[#allocation8] sm:$0x1] %v230
    // Predicated region
    $region34: #{tpu_custom_call.1} parent=1 // pred_check
      _
    $region35: #{tpu_custom_call.1} parent=1 // pred_check_branch
      %233 = sbr.rel (0) target = $region37
    $region36: #{tpu_custom_call.1} parent=1 // pred_region
      %s235 = ssub.s32 16, 16
      %236 = vsyncadd [#allocation4], %s235
      %s238 = sshll.u32 [#allocation8], 4
      %s239 = int_to_ptr.vmem [resolvable:$true] %s238
      %241 = dma.vmem_to_hbm [thread:$0]  %s239, 16, %s5, [#allocation4]
    $region37: #{tpu_custom_call.1} parent=1 // pred_fallthru
      _
    // Predicated region
    $region38: #{tpu_custom_call.1} parent=1 // pred_check
      _
    $region39: #{tpu_custom_call.1} parent=1 // pred_check_branch
      %243 = sbr.rel (0) target = $region41
    $region40: #{tpu_custom_call.1} parent=1 // pred_region
      %244 = dma.done [#allocation4], 16
    $region41: #{tpu_custom_call.1} parent=1 // pred_fallthru
      _
    %245 = vsyncpa [#allocation3], 1
    %246 = vsyncpa [#allocation6], 1
    %247 = vsyncpa [#allocation4], 1

</llo_original>
